<compile_context>
chip_gen: v5e
topology: v5e:2x2
jax: 0.10.0
libtpu: 0.0.40
codegen_flags: <defaults>
</compile_context>

<pallas_src>
import jax
import jax.numpy as jnp
from jax.experimental import pallas as pl
from jax.experimental.pallas import tpu as pltpu

LANE = 128
TB_MAX_DEFAULT = 256 * 1024      # lanes per tile; 24*tb bytes ~= 6 MiB double-buffered


def _round_up(a, m):
    return -(-a // m) * m


def _choose_tiling(batch, tb_max):
    """Pick (tile_width, num_tiles, padded_batch).

    tile_width is a multiple of 128; the grid has >= 2 steps whenever the
    batch spans more than one 128-lane group (v7x megacore split); the
    per-step footprint (~24 * tb bytes) stays under tb_max lanes so the
    default scoped-VMEM limit is honored on every generation.
    """
    tb_max = max(LANE, (tb_max // LANE) * LANE)        # defensive 128-alignment
    b_lane = _round_up(batch, LANE)
    if b_lane <= LANE:
        tb = LANE                                      # single 128-lane tile
    else:
        n = max(2, -(-b_lane // tb_max))               # >= 2 tiles for v7x both-TC use
        tb = min(tb_max, _round_up(-(-b_lane // n), LANE))
    b_pad = _round_up(batch, tb)
    return tb, b_pad // tb, b_pad


def mlp_kernel(x_ref, w1_ref, b1_ref, w2_ref, b2_ref, o_ref):
    x = x_ref[...]                                     # (2, tb)   batch on lanes
    w1 = w1_ref[...]                                   # (20, 2)   torch layout (out, in)
    # Hidden layer as VPU broadcast multiply-adds:
    #   h[j, :] = relu(w1[j,0]*x[0,:] + w1[j,1]*x[1,:] + b1[j])
    h = w1[:, 0:1] * x[0:1, :] + w1[:, 1:2] * x[1:2, :] + b1_ref[...]   # (20, tb)
    h = jnp.maximum(h, 0.0)                            # ReLU (VPU)
    # Output layer: y = sum_j w2[j] * h[j, :] + b2     (sublane reduce -> XLU)
    y = jnp.sum(w2_ref[...] * h, axis=0, keepdims=True) + b2_ref[...]   # (1, tb)
    # sigmoid via tanh (exact); transcendental runs in the idle EUP slot.
    o_ref[...] = (0.5 * jnp.tanh(0.5 * y) + 0.5).astype(o_ref.dtype)


def circle_classifier_forward_t(x_t, w1, b1, w2, b2, *, tb_max=TB_MAX_DEFAULT):
    """Feature-major forward. x_t: (2, B) f32. Returns (1, B) f32.

    No extra HBM pass when B is already a multiple of the chosen tile width.
    """
    B = x_t.shape[1]
    tb, n_tiles, b_pad = _choose_tiling(B, tb_max)
    if b_pad != B:
        x_t = jnp.pad(x_t, ((0, 0), (0, b_pad - B)))   # single fused pad (if needed)

    # Params in broadcast-friendly column layouts (tiny, host-side, one-time).
    b1_c = b1.reshape(20, 1)
    w2_c = w2.reshape(1, 20).T                         # (20, 1)
    b2_c = b2.reshape(1, 1)

    out_t = pl.pallas_call(
        mlp_kernel,
        out_shape=jax.ShapeDtypeStruct((1, b_pad), jnp.float32),
        grid=(n_tiles,),
        in_specs=[
            pl.BlockSpec((2, tb), lambda i: (0, i)),   # x tile, double-buffered
            pl.BlockSpec((20, 2), lambda i: (0, 0)),   # weights stay resident
            pl.BlockSpec((20, 1), lambda i: (0, 0)),
            pl.BlockSpec((20, 1), lambda i: (0, 0)),
            pl.BlockSpec((1, 1), lambda i: (0, 0)),
        ],
        out_specs=pl.BlockSpec((1, tb), lambda i: (0, i)),  # lane-dense output
        compiler_params=pltpu.CompilerParams(
            dimension_semantics=("parallel",)),             # v7x: shard over both TCs
    )(x_t, w1, b1_c, w2_c, b2_c)

    return out_t[:, :B]


def circle_classifier_forward(x, w1, b1, w2, b2, *, tb_max=TB_MAX_DEFAULT):
    """Module-layout forward (matches the PyTorch module): x (B, 2) -> (B, 1).

    The (B, 2) -> (2, B) relayout is one fused transpose(+pad) pass; callers
    holding feature-major activations should use circle_classifier_forward_t.
    """
    B = x.shape[0]
    out_t = circle_classifier_forward_t(x.T, w1, b1, w2, b2, tb_max=tb_max)
    return out_t.reshape(B, 1)         # (1, B) -> (B, 1): free row-major reshape


def init_params(key):
    # Deterministic init mimicking nn.Linear default (uniform(-1/sqrt(fan_in), +)),
    # stored in torch layouts: weight (out, in), bias (out,).
    k1, k2, k3, k4 = jax.random.split(key, 4)
    lim1 = 1.0 / jnp.sqrt(2.0)
    lim2 = 1.0 / jnp.sqrt(20.0)
    w1 = jax.random.uniform(k1, (20, 2), jnp.float32, -lim1, lim1)
    b1 = jax.random.uniform(k2, (20,), jnp.float32, -lim1, lim1)
    w2 = jax.random.uniform(k3, (1, 20), jnp.float32, -lim2, lim2)
    b2 = jax.random.uniform(k4, (1,), jnp.float32, -lim2, lim2)
    return w1, b1, w2, b2


def _reference(x, w1, b1, w2, b2):
    h = jnp.maximum(x @ w1.T + b1, 0.0)
    return jax.nn.sigmoid(h @ w2.T + b2)


if __name__ == "__main__":
    key = jax.random.PRNGKey(0)
    kx, kp = jax.random.split(key)
    w1, b1, w2, b2 = init_params(kp)

    # Small single-tile check (B=8 pads to one 128-lane tile).
    B = 8
    x = jax.random.normal(kx, (B, 2), jnp.float32)
    out = circle_classifier_forward(x, w1, b1, w2, b2)
    jax.block_until_ready(out)
    ref = _reference(x, w1, b1, w2, b2)
    assert out.shape == (B, 1)
    assert jnp.allclose(out, ref, atol=1e-5, rtol=1e-5)

    # Multi-tile check: >=2-tile grid, ragged pad slice-off, and defensive
    # rounding of a non-multiple-of-128 tb_max.
    B2 = 300
    x2 = jax.random.normal(jax.random.PRNGKey(1), (B2, 2), jnp.float32)
    out2 = circle_classifier_forward(x2, w1, b1, w2, b2, tb_max=200)
    jax.block_until_ready(out2)
    ref2 = _reference(x2, w1, b1, w2, b2)
    assert out2.shape == (B2, 1)
    assert jnp.allclose(out2, ref2, atol=1e-5, rtol=1e-5)

    # Default (large-tile) path: still splits into 2 "parallel" tiles for v7x.
    B3 = 4096
    x3 = jax.random.normal(jax.random.PRNGKey(2), (B3, 2), jnp.float32)
    out3 = circle_classifier_forward(x3, w1, b1, w2, b2)
    jax.block_until_ready(out3)
    ref3 = _reference(x3, w1, b1, w2, b2)
    assert out3.shape == (B3, 1)
    assert jnp.allclose(out3, ref3, atol=1e-5, rtol=1e-5)

    print("KERNEL_OK")
</pallas_src>

<mosaic_0001>
module attributes {stable_mosaic.version = 11 : i64} {
  func.func @mlp_kernel(%arg0: i32, %arg1: memref<2x128xf32, #tpu.memory_space<vmem>>, %arg2: memref<20x2xf32, #tpu.memory_space<vmem>>, %arg3: memref<20x1xf32, #tpu.memory_space<vmem>>, %arg4: memref<20x1xf32, #tpu.memory_space<vmem>>, %arg5: memref<1x1xf32, #tpu.memory_space<vmem>>, %arg6: memref<1x128xf32, #tpu.memory_space<vmem>>) attributes {dimension_semantics = [#tpu.dimension_semantics<parallel>], iteration_bounds = array<i64: 1>, scalar_prefetch = 0 : i64, scratch_operands = 0 : i64, tpu.core_type = #tpu.core_type<tc>, window_params = [{transform_indices = @transform_0, window_bounds = array<i64: 2, 128>}, {pipeline_mode = #tpu.pipeline_mode<synchronous>, transform_indices = @transform_1, window_bounds = array<i64: 20, 2>}, {pipeline_mode = #tpu.pipeline_mode<synchronous>, transform_indices = @transform_2, window_bounds = array<i64: 20, 1>}, {pipeline_mode = #tpu.pipeline_mode<synchronous>, transform_indices = @transform_3, window_bounds = array<i64: 20, 1>}, {pipeline_mode = #tpu.pipeline_mode<synchronous>, transform_indices = @transform_4, window_bounds = array<i64: 1, 1>}, {transform_indices = @transform_5, window_bounds = array<i64: 1, 128>}]} {
    %c0 = arith.constant 0 : index
    %c0_0 = arith.constant 0 : index
    %0 = vector.load %arg1[%c0, %c0_0] : memref<2x128xf32, #tpu.memory_space<vmem>>, vector<2x128xf32>
    %c0_1 = arith.constant 0 : index
    %c0_2 = arith.constant 0 : index
    %1 = vector.load %arg2[%c0_1, %c0_2] : memref<20x2xf32, #tpu.memory_space<vmem>>, vector<20x2xf32>
    %2 = vector.extract_strided_slice %1 {offsets = [0, 0], sizes = [20, 1], strides = [1, 1]} : vector<20x2xf32> to vector<20x1xf32>
    %3 = vector.extract_strided_slice %0 {offsets = [0, 0], sizes = [1, 128], strides = [1, 1]} : vector<2x128xf32> to vector<1x128xf32>
    %4 = vector.broadcast %2 : vector<20x1xf32> to vector<20x128xf32>
    %5 = vector.broadcast %3 : vector<1x128xf32> to vector<20x128xf32>
    %6 = arith.mulf %4, %5 : vector<20x128xf32>
    %7 = vector.extract_strided_slice %1 {offsets = [0, 1], sizes = [20, 1], strides = [1, 1]} : vector<20x2xf32> to vector<20x1xf32>
    %8 = vector.extract_strided_slice %0 {offsets = [1, 0], sizes = [1, 128], strides = [1, 1]} : vector<2x128xf32> to vector<1x128xf32>
    %9 = vector.broadcast %7 : vector<20x1xf32> to vector<20x128xf32>
    %10 = vector.broadcast %8 : vector<1x128xf32> to vector<20x128xf32>
    %11 = arith.mulf %9, %10 : vector<20x128xf32>
    %12 = arith.addf %6, %11 : vector<20x128xf32>
    %c0_3 = arith.constant 0 : index
    %c0_4 = arith.constant 0 : index
    %13 = vector.load %arg3[%c0_3, %c0_4] : memref<20x1xf32, #tpu.memory_space<vmem>>, vector<20x1xf32>
    %14 = vector.broadcast %13 : vector<20x1xf32> to vector<20x128xf32>
    %15 = arith.addf %12, %14 : vector<20x128xf32>
    %cst = arith.constant 0.000000e+00 : f32
    %16 = vector.broadcast %cst : f32 to vector<20x128xf32>
    %17 = arith.maximumf %15, %16 : vector<20x128xf32>
    %c0_5 = arith.constant 0 : index
    %c0_6 = arith.constant 0 : index
    %18 = vector.load %arg4[%c0_5, %c0_6] : memref<20x1xf32, #tpu.memory_space<vmem>>, vector<20x1xf32>
    %19 = vector.broadcast %18 : vector<20x1xf32> to vector<20x128xf32>
    %20 = arith.mulf %19, %17 : vector<20x128xf32>
    %cst_7 = arith.constant dense<0.000000e+00> : vector<128xf32>
    %21 = vector.multi_reduction <add>, %20, %cst_7 [0] : vector<20x128xf32> to vector<128xf32>
    %22 = vector.shape_cast %21 : vector<128xf32> to vector<1x128xf32>
    %c0_8 = arith.constant 0 : index
    %c0_9 = arith.constant 0 : index
    %23 = vector.load %arg5[%c0_8, %c0_9] : memref<1x1xf32, #tpu.memory_space<vmem>>, vector<1x1xf32>
    %24 = vector.broadcast %23 : vector<1x1xf32> to vector<1x128xf32>
    %25 = arith.addf %22, %24 : vector<1x128xf32>
    %cst_10 = arith.constant 5.000000e-01 : f32
    %26 = vector.broadcast %cst_10 : f32 to vector<1x128xf32>
    %27 = arith.mulf %26, %25 : vector<1x128xf32>
    %28 = math.tanh %27 : vector<1x128xf32>
    %cst_11 = arith.constant 5.000000e-01 : f32
    %29 = vector.broadcast %cst_11 : f32 to vector<1x128xf32>
    %30 = arith.mulf %29, %28 : vector<1x128xf32>
    %cst_12 = arith.constant 5.000000e-01 : f32
    %31 = vector.broadcast %cst_12 : f32 to vector<1x128xf32>
    %32 = arith.addf %30, %31 : vector<1x128xf32>
    %c0_13 = arith.constant 0 : index
    %c0_14 = arith.constant 0 : index
    %33 = vector.load %arg6[%c0_13, %c0_14] : memref<1x128xf32, #tpu.memory_space<vmem>>, vector<1x128xf32>
    tpu.vector_store %arg6[%c0_13, %c0_14], %32 {strides = array<i32>} : memref<1x128xf32, #tpu.memory_space<vmem>>, vector<1x128xf32>,
    return
  }
  func.func @transform_0(%arg0: i32) -> (i32, i32) {
    %c0_i32 = arith.constant 0 : i32
    %c0_i32_0 = arith.constant 0 : i32
    return %c0_i32, %arg0 : i32, i32
  }
  func.func @transform_1(%arg0: i32) -> (i32, i32) {
    %c0_i32 = arith.constant 0 : i32
    %c0_i32_0 = arith.constant 0 : i32
    %c0_i32_1 = arith.constant 0 : i32
    return %c0_i32, %c0_i32_0 : i32, i32
  }
  func.func @transform_2(%arg0: i32) -> (i32, i32) {
    %c0_i32 = arith.constant 0 : i32
    %c0_i32_0 = arith.constant 0 : i32
    %c0_i32_1 = arith.constant 0 : i32
    return %c0_i32, %c0_i32_0 : i32, i32
  }
  func.func @transform_3(%arg0: i32) -> (i32, i32) {
    %c0_i32 = arith.constant 0 : i32
    %c0_i32_0 = arith.constant 0 : i32
    %c0_i32_1 = arith.constant 0 : i32
    return %c0_i32, %c0_i32_0 : i32, i32
  }
  func.func @transform_4(%arg0: i32) -> (i32, i32) {
    %c0_i32 = arith.constant 0 : i32
    %c0_i32_0 = arith.constant 0 : i32
    %c0_i32_1 = arith.constant 0 : i32
    return %c0_i32, %c0_i32_0 : i32, i32
  }
  func.func @transform_5(%arg0: i32) -> (i32, i32) {
    %c0_i32 = arith.constant 0 : i32
    %c0_i32_0 = arith.constant 0 : i32
    return %c0_i32, %arg0 : i32, i32
  }
}

</mosaic_0001>

<llo_original>
// kernel: tpu_custom_call.1
$region0: #{tpu_custom_call.1}
  #allocation0 [shape = 'u32[]', space=smem, size = 0x4, offset = 0x4, fixed_abs, tag = 'smem constant byte address 0x4 - core index']
  #allocation1 [shape = 'u32[72,128]{1,0:T(1,128)}', space=vmem, size = 0x9000, scoped, tag = 'internal scratch']
  #allocation2 [shape = 'f32[1,1]{1,0:T(1,128)S(1)}', space=vmem, size = 0x200, scoped, tag = 'scoped memory for tpu_custom_call.1']
  %s0 = inlined_call_operand.vmem [shape: f32[2,128], index: 0, kind: input, shape index: {}]
  %s1 = inlined_call_operand.vmem [shape: f32[20,2], index: 1, kind: input, shape index: {}]
  %s2 = inlined_call_operand.vmem [shape: f32[20,1], index: 2, kind: input, shape index: {}]
  %s3 = inlined_call_operand.vmem [shape: f32[20,1], index: 3, kind: input, shape index: {}]
  %s4 = inlined_call_operand.<no memory space> [shape: f32[1,1], index: 4, kind: input, shape index: {}]
  %s5 = inlined_call_operand.hbm [shape: f32[1,128], index: 5, kind: output, shape index: {}]
  %s6 = sld [smem:[#allocation0]]
  $region30: #{tpu_custom_call.1} parent=0
    _
  %s8 = ssub.s32 1, %s6
  %s9 = scalar_select 0, %s8, %s6
  %v10 = vstv %s4
  %11 = vst [vmem:[#allocation2] sm:$0x1] %v10
  $region1: #{tpu_custom_call.1} parent=0
    #allocation3 [shape = 'u8[512]{0}', space=vmem, size = 0x400, scoped, tag = 'output window, operand 0, single buffered']
    #allocation4 [shape = 's32[1]{0}', space=sflag, size = 0x4, scoped, tag = 'scoped memory for tpu_custom_call.1']
    %12 = vsyncpa [#allocation4], 0
    // Predicated region
    $region2: #{tpu_custom_call.1} parent=1 // pred_check
      _
    $region3: #{tpu_custom_call.1} parent=1 // pred_check_branch
      %14 = sbr.rel (0) target = $region5
    $region4: #{tpu_custom_call.1} parent=1 // pred_region
      _
    $region5: #{tpu_custom_call.1} parent=1 // pred_fallthru
      _
    // Predicated region
    $region6: #{tpu_custom_call.1} parent=1 // pred_check
      _
    $region7: #{tpu_custom_call.1} parent=1 // pred_check_branch
      %16 = sbr.rel (0) target = $region9
    $region8: #{tpu_custom_call.1} parent=1 // pred_region
      _
    $region9: #{tpu_custom_call.1} parent=1 // pred_fallthru
      _
    // Predicated region
    $region10: #{tpu_custom_call.1} parent=1 // pred_check
      _
    $region11: #{tpu_custom_call.1} parent=1 // pred_check_branch
      %18 = sbr.rel (0) target = $region13
    $region12: #{tpu_custom_call.1} parent=1 // pred_region
      _
    $region13: #{tpu_custom_call.1} parent=1 // pred_fallthru
      _
    // Predicated region
    $region14: #{tpu_custom_call.1} parent=1 // pred_check
      _
    $region15: #{tpu_custom_call.1} parent=1 // pred_check_branch
      %20 = sbr.rel (0) target = $region17
    $region16: #{tpu_custom_call.1} parent=1 // pred_region
      _
    $region17: #{tpu_custom_call.1} parent=1 // pred_fallthru
      _
    // Predicated region
    $region18: #{tpu_custom_call.1} parent=1 // pred_check
      _
    $region19: #{tpu_custom_call.1} parent=1 // pred_check_branch
      %22 = sbr.rel (0) target = $region21
    $region20: #{tpu_custom_call.1} parent=1 // pred_region
      _
    $region21: #{tpu_custom_call.1} parent=1 // pred_fallthru
      _
    %v23 = vld [vmem:[%s0] sm:$0x3]
    %v24 = vld [vmem:[%s1] sm:$0xff]
    %v25 = vld [vmem:[%s1 + $0x8] sm:$0xff]
    %v26 = vld [vmem:[%s1 + $0x10] sm:$0xf]
    %28 = vset.pattern.permute.xlu0 0
    %29 = vperm.xlu0 %28, %v24
    %v30 = vpop.permute.xlu0 %29
    %33 = vset.pattern.permute.xlu0 0
    %34 = vperm.xlu0 %33, %v25
    %v35 = vpop.permute.xlu0 %34
    %38 = vset.pattern.permute.xlu0 0
    %39 = vperm.xlu0 %38, %v26
    %v40 = vpop.permute.xlu0 %39
    %v42 = vperm.slane %v23, 0
    %v43 = vmul.f32 %v30, %v42
    %v44 = vmul.f32 %v35, %v42
    %v45 = vmul.f32 %v40, %v42
    %46 = vset.pattern.permute.xlu0 1
    %47 = vperm.xlu0 %46, %v24
    %v48 = vpop.permute.xlu0 %47
    %50 = vset.pattern.permute.xlu0 1
    %51 = vperm.xlu0 %50, %v25
    %v52 = vpop.permute.xlu0 %51
    %54 = vset.pattern.permute.xlu0 1
    %55 = vperm.xlu0 %54, %v26
    %v56 = vpop.permute.xlu0 %55
    %v58 = vperm.slane %v23, 1
    %v59 = vmul.f32 %v48, %v58
    %v60 = vmul.f32 %v52, %v58
    %v61 = vmul.f32 %v56, %v58
    %v62 = vadd.f32 %v43, %v59
    %v63 = vadd.f32 %v44, %v60
    %v64 = vadd.f32 %v45, %v61
    %v65 = vld [vmem:[%s2] sm:$0xff]
    %v66 = vld [vmem:[%s2 + $0x8] sm:$0xff]
    %v67 = vld [vmem:[%s2 + $0x10] sm:$0xf]
    %69 = vset.pattern.permute.xlu0 0
    %70 = vperm.xlu0 %69, %v65
    %v71 = vpop.permute.xlu0 %70
    %74 = vset.pattern.permute.xlu0 0
    %75 = vperm.xlu0 %74, %v66
    %v76 = vpop.permute.xlu0 %75
    %79 = vset.pattern.permute.xlu0 0
    %80 = vperm.xlu0 %79, %v67
    %v81 = vpop.permute.xlu0 %80
    %v83 = vadd.f32 %v62, %v71
    %v84 = vadd.f32 %v63, %v76
    %v85 = vadd.f32 %v64, %v81
    %v86 = vmax.f32 %v83, 0.0
    %v87 = vmax.f32 %v84, 0.0
    %v88 = vmax.f32 %v85, 0.0
    %v89 = vld [vmem:[%s3] sm:$0xff]
    %v90 = vld [vmem:[%s3 + $0x8] sm:$0xff]
    %v91 = vld [vmem:[%s3 + $0x10] sm:$0xf]
    %93 = vset.pattern.permute.xlu0 0
    %94 = vperm.xlu0 %93, %v89
    %v95 = vpop.permute.xlu0 %94
    %98 = vset.pattern.permute.xlu0 0
    %99 = vperm.xlu0 %98, %v90
    %v100 = vpop.permute.xlu0 %99
    %103 = vset.pattern.permute.xlu0 0
    %104 = vperm.xlu0 %103, %v91
    %v105 = vpop.permute.xlu0 %104
    %v107 = vmul.f32 %v95, %v86
    %v108 = vmul.f32 %v100, %v87
    %v109 = vmul.f32 %v105, %v88
    %v110 = vadd.f32 %v107, %v108
    %vm111 = vcmask 1043456
    %v112 = vsel %vm111, %v109, 0.0
    %v113 = vadd.f32 %v110, %v112
    %v114 = vrot.slane %v113, 4
    %v115 = vadd.f32 %v113, %v114
    %v116 = vrot.slane %v115, 2
    %v117 = vadd.f32 %v115, %v116
    %v118 = vrot.slane %v117, 1
    %v119 = vadd.f32 %v117, %v118
    %v120 = vld [vmem:[#allocation2] sm:$0x1]
    %122 = vset.pattern.permute.xlu0 0
    %123 = vperm.xlu0 %122, %v120
    %v124 = vpop.permute.xlu0 %123
    %v126 = vperm.slane %v124, 0
    %v127 = vadd.f32 %v119, %v126
    %v128 = vmul.f32 %v127, 0.5
    %v129 = vtanh.pop %v128
    %v130 = vmul.f32 %v129, 0.5
    %v131 = vadd.f32 %v130, 0.5
    %132 = vst [vmem:[#allocation3] sm:$0x1] %v131
    // Predicated region
    $region22: #{tpu_custom_call.1} parent=1 // pred_check
      _
    $region23: #{tpu_custom_call.1} parent=1 // pred_check_branch
      %134 = sbr.rel (0) target = $region25
    $region24: #{tpu_custom_call.1} parent=1 // pred_region
      %136 = vsyncadd [#allocation4], 0
      %s138 = sshll.u32 [#allocation3], 4
      %s139 = int_to_ptr.vmem [resolvable:$true] %s138
      %s140 = sshll.u32 %s5, 4
      %s141 = int_to_ptr.hbm [resolvable:$true] %s140
      %143 = dma.vmem_to_hbm [thread:$0]  %s139, 16, %s141, [#allocation4]
    $region25: #{tpu_custom_call.1} parent=1 // pred_fallthru
      _
    // Predicated region
    $region26: #{tpu_custom_call.1} parent=1 // pred_check
      _
    $region27: #{tpu_custom_call.1} parent=1 // pred_check_branch
      %145 = sbr.rel (0) target = $region29
    $region28: #{tpu_custom_call.1} parent=1 // pred_region
      %147 = dma.done [#allocation4], 16
    $region29: #{tpu_custom_call.1} parent=1 // pred_fallthru
      _
    %148 = vsyncpa [#allocation4], 1

</llo_original>
